<compile_context>
chip_gen: v5e
topology: v5e:2x2
jax: 0.10.0
libtpu: 0.0.40
codegen_flags: <defaults>
</compile_context>

<pallas_src>
import jax
import jax.numpy as jnp
from jax.experimental import pallas as pl
from jax.experimental.pallas import tpu as pltpu

_LANE = 128
_SUB = 8
_BYTES = 4  # float32


def _round_up(v, m):
    return ((v + m - 1) // m) * m


def _physical_vmem_bytes():
    """Per-TensorCore physical VMEM: v4/v5e/v6e -> 128 MiB, v7x/unknown -> 64 MiB."""
    try:
        kind = jax.devices()[0].device_kind.lower()
    except Exception:
        kind = ""
    if "v4" in kind or "v5" in kind or "v6" in kind:
        return 128 * 1024 * 1024
    # Unknown / v7x: assume the smaller 64 MiB-per-TC part (also accounts for
    # the resident weight being duplicated on both TCs under 'parallel').
    return 64 * 1024 * 1024


def _linear_kernel(x_ref, w_ref, b_ref, o_ref, acc_ref):
    # x_ref: (TB, TK), w_ref: (O_pad, TK), b_ref: (1, O_pad),
    # o_ref: (TB, O_pad), acc_ref: (TB, O_pad) f32 scratch.
    k = pl.program_id(1)

    @pl.when(k == 0)
    def _():
        acc_ref[...] = jnp.zeros_like(acc_ref)

    # Contract x's dim 1 against w's dim 1 (transposed-RHS handled by the MXU).
    acc_ref[...] += jax.lax.dot_general(
        x_ref[...], w_ref[...],
        dimension_numbers=(((1,), (1,)), ((), ())),
        preferred_element_type=jnp.float32,
    )

    @pl.when(k == pl.num_programs(1) - 1)
    def _():
        o_ref[...] = (acc_ref[...] + b_ref[...]).astype(o_ref.dtype)


def logistic_regression_forward(x, weight, bias, *, max_tile_batch=8192):
    """Equivalent of torch.nn.Linear(input_dim, output_dim)(x).

    x:      (B, input_dim)   float32
    weight: (output_dim, input_dim) float32  (PyTorch convention)
    bias:   (output_dim,)    float32
    returns (B, output_dim)  float32
    """
    B, D = x.shape
    O = weight.shape[0]

    # --- Lane-dense output: pad the class dim to a multiple of 128. ----------
    O_pad = max(_LANE, _round_up(O, _LANE))
    if O_pad != O:
        weight = jnp.pad(weight, ((0, O_pad - O), (0, 0)))
        bias = jnp.pad(bias, (0, O_pad - O))
    b2 = bias.reshape(1, O_pad)

    phys = _physical_vmem_bytes()
    tile_budget = (phys * 3) // 5                  # ~60% of physical -> tiles
    vmem_limit = phys - 16 * 1024 * 1024           # headroom for compiler scratch

    # --- Contraction (D) tiling ----------------------------------------------
    # One weight buffer costs O_pad * roundup(D,128) * 4 bytes (lane padding);
    # the pipeliner double-buffers it even with a constant index_map -> count 2x.
    d_lanes_full = _round_up(D, _LANE)
    w_full_vmem = 2 * O_pad * d_lanes_full * _BYTES
    if w_full_vmem <= tile_budget // 2:
        # Common case: full (O_pad, D) weight is VMEM resident (constant block
        # index -> fetched from HBM once).  No padding of D needed.
        tk = D
        num_k = 1
    else:
        # Scalability fallback: stream weight tiles along the contraction dim.
        tk = ((tile_budget // 3) // (2 * O_pad * _BYTES)) // _LANE * _LANE
        tk = max(_LANE, min(tk, d_lanes_full))
        # TODO(synk): if O_pad alone is so large that an (O_pad, 128) weight
        # tile cannot fit VMEM, an additional output-class grid axis is needed.
        d_pad = _round_up(D, tk)
        if d_pad != D:
            # Zero padding along the contraction dim leaves the result unchanged.
            x = jnp.pad(x, ((0, 0), (0, d_pad - D)))
            weight = jnp.pad(weight, ((0, 0), (0, d_pad - D)))
        num_k = d_pad // tk

    # --- Batch tile size (bytes-driven, lane-padded accounting) --------------
    tk_lanes = _round_up(tk, _LANE)
    w_vmem = 2 * O_pad * tk_lanes * _BYTES          # double-buffered weight tile
    bias_vmem = 2 * _SUB * O_pad * _BYTES           # (1, O_pad) pads to 8 sublanes
    per_row = _BYTES * (2 * tk_lanes + 3 * O_pad)   # x(2 bufs) + out(2 bufs) + acc(1)
    avail = tile_budget - w_vmem - bias_vmem
    tb = max(_SUB, (avail // per_row) // _SUB * _SUB)
    tb = min(tb, max_tile_batch)
    # Keep >= ~4 batch grid steps for pipelining and so the 'parallel' axis can
    # shard across both v7x TensorCores.  No wrapper-side padding of x: the grid
    # uses cdiv and the ragged last block's over-read rows only produce output
    # rows beyond B, which are clamped on writeback.
    tb = min(tb, max(_SUB, _round_up(pl.cdiv(B, 4), _SUB)))

    num_b = pl.cdiv(B, tb)

    out = pl.pallas_call(
        _linear_kernel,
        out_shape=jax.ShapeDtypeStruct((B, O_pad), x.dtype),
        grid_spec=pltpu.PrefetchScalarGridSpec(
            num_scalar_prefetch=0,
            grid=(num_b, num_k),
            in_specs=[
                pl.BlockSpec((tb, tk), lambda i, k: (i, k)),      # x: streamed
                pl.BlockSpec((O_pad, tk), lambda i, k: (0, k)),   # weight
                pl.BlockSpec((1, O_pad), lambda i, k: (0, 0)),    # bias: resident
            ],
            out_specs=pl.BlockSpec((tb, O_pad), lambda i, k: (i, 0)),
            scratch_shapes=[pltpu.VMEM((tb, O_pad), jnp.float32)],
        ),
        compiler_params=pltpu.CompilerParams(
            dimension_semantics=("parallel", "arbitrary"),
            vmem_limit_bytes=vmem_limit,
        ),
    )(x, weight, b2)

    # Slice away class padding (no batch padding was introduced).
    return out[:, :O] if O_pad != O else out


if __name__ == "__main__":
    key = jax.random.PRNGKey(0)
    kx, kw, kb = jax.random.split(key, 3)

    batch = 8
    input_dim = 32
    output_dim = 16

    # Deterministic synthetic parameters (nn.Linear-style uniform init bounds).
    x = jax.random.normal(kx, (batch, input_dim), dtype=jnp.float32)
    bound = 1.0 / (input_dim ** 0.5)
    weight = jax.random.uniform(kw, (output_dim, input_dim),
                                minval=-bound, maxval=bound, dtype=jnp.float32)
    bias = jax.random.uniform(kb, (output_dim,),
                              minval=-bound, maxval=bound, dtype=jnp.float32)

    out = logistic_regression_forward(x, weight, bias)
    out = jax.block_until_ready(out)

    # Sanity check against plain-JAX reference (forward has no sigmoid).
    ref = x @ weight.T + bias
    assert out.shape == (batch, output_dim)
    assert jnp.allclose(out, ref, atol=1e-5, rtol=1e-5)

    print("KERNEL_OK")
</pallas_src>

<mosaic_0001>
module attributes {stable_mosaic.version = 11 : i64} {
  func.func @_linear_kernel(%arg0: i32, %arg1: i32, %arg2: memref<8x32xf32, #tpu.memory_space<vmem>>, %arg3: memref<128x32xf32, #tpu.memory_space<vmem>>, %arg4: memref<1x128xf32, #tpu.memory_space<vmem>>, %arg5: memref<8x128xf32, #tpu.memory_space<vmem>>, %arg6: memref<8x128xf32, #tpu.memory_space<vmem>>) attributes {dimension_semantics = [#tpu.dimension_semantics<parallel>, #tpu.dimension_semantics<arbitrary>], iteration_bounds = array<i64: 1, 1>, scalar_prefetch = 0 : i64, scratch_operands = 1 : i64, tpu.core_type = #tpu.core_type<tc>, window_params = [{transform_indices = @transform_0, window_bounds = array<i64: 8, 32>}, {transform_indices = @transform_1, window_bounds = array<i64: 128, 32>}, {pipeline_mode = #tpu.pipeline_mode<synchronous>, transform_indices = @transform_2, window_bounds = array<i64: 1, 128>}, {transform_indices = @transform_3, window_bounds = array<i64: 8, 128>}]} {
    %c0_i32 = arith.constant 0 : i32
    %0 = arith.cmpi eq, %arg1, %c0_i32 : i32
    %1 = arith.extui %0 : i1 to i32
    %c0_i32_0 = arith.constant 0 : i32
    %2 = arith.cmpi ne, %1, %c0_i32_0 : i32
    scf.if %2 {
      %cst_10 = arith.constant 0.000000e+00 : f32
      %12 = vector.broadcast %cst_10 : f32 to vector<8x128xf32>
      %c0_11 = arith.constant 0 : index
      %c0_12 = arith.constant 0 : index
      %13 = vector.load %arg6[%c0_11, %c0_12] : memref<8x128xf32, #tpu.memory_space<vmem>>, vector<8x128xf32>
      tpu.vector_store %arg6[%c0_11, %c0_12], %12 {strides = array<i32>} : memref<8x128xf32, #tpu.memory_space<vmem>>, vector<8x128xf32>,
    } else {
    }
    %c0 = arith.constant 0 : index
    %c0_1 = arith.constant 0 : index
    %3 = vector.load %arg6[%c0, %c0_1] : memref<8x128xf32, #tpu.memory_space<vmem>>, vector<8x128xf32>
    %c0_2 = arith.constant 0 : index
    %c0_3 = arith.constant 0 : index
    %4 = vector.load %arg2[%c0_2, %c0_3] : memref<8x32xf32, #tpu.memory_space<vmem>>, vector<8x32xf32>
    %c0_4 = arith.constant 0 : index
    %c0_5 = arith.constant 0 : index
    %5 = vector.load %arg3[%c0_4, %c0_5] : memref<128x32xf32, #tpu.memory_space<vmem>>, vector<128x32xf32>
    %cst = arith.constant dense<0.000000e+00> : vector<8x128xf32>
    %6 = tpu.matmul %4, %5, %cst {dimension_numbers = #tpu.dot_dimension_numbers<[1], [1], [0], [0], [0, 0, 1, 0], [], []>} : vector<8x32xf32>, vector<128x32xf32>, vector<8x128xf32> -> vector<8x128xf32>
    %7 = arith.addf %3, %6 : vector<8x128xf32>
    %c0_6 = arith.constant 0 : index
    %c0_7 = arith.constant 0 : index
    %8 = vector.load %arg6[%c0_6, %c0_7] : memref<8x128xf32, #tpu.memory_space<vmem>>, vector<8x128xf32>
    tpu.vector_store %arg6[%c0_6, %c0_7], %7 {strides = array<i32>} : memref<8x128xf32, #tpu.memory_space<vmem>>, vector<8x128xf32>,
    %c0_i32_8 = arith.constant 0 : i32
    %9 = arith.cmpi eq, %arg1, %c0_i32_8 : i32
    %10 = arith.extui %9 : i1 to i32
    %c0_i32_9 = arith.constant 0 : i32
    %11 = arith.cmpi ne, %10, %c0_i32_9 : i32
    scf.if %11 {
      %c0_10 = arith.constant 0 : index
      %c0_11 = arith.constant 0 : index
      %12 = vector.load %arg6[%c0_10, %c0_11] : memref<8x128xf32, #tpu.memory_space<vmem>>, vector<8x128xf32>
      %c0_12 = arith.constant 0 : index
      %c0_13 = arith.constant 0 : index
      %13 = vector.load %arg4[%c0_12, %c0_13] : memref<1x128xf32, #tpu.memory_space<vmem>>, vector<1x128xf32>
      %14 = vector.broadcast %13 : vector<1x128xf32> to vector<8x128xf32>
      %15 = arith.addf %12, %14 : vector<8x128xf32>
      %c0_14 = arith.constant 0 : index
      %c0_15 = arith.constant 0 : index
      %16 = vector.load %arg5[%c0_14, %c0_15] : memref<8x128xf32, #tpu.memory_space<vmem>>, vector<8x128xf32>
      tpu.vector_store %arg5[%c0_14, %c0_15], %15 {strides = array<i32>} : memref<8x128xf32, #tpu.memory_space<vmem>>, vector<8x128xf32>,
    } else {
    }
    return
  }
  func.func @transform_0(%arg0: i32, %arg1: i32) -> (i32, i32) {
    %c0_i32 = arith.constant 0 : i32
    return %arg0, %arg1 : i32, i32
  }
  func.func @transform_1(%arg0: i32, %arg1: i32) -> (i32, i32) {
    %c0_i32 = arith.constant 0 : i32
    %c0_i32_0 = arith.constant 0 : i32
    return %c0_i32, %arg1 : i32, i32
  }
  func.func @transform_2(%arg0: i32, %arg1: i32) -> (i32, i32) {
    %c0_i32 = arith.constant 0 : i32
    %c0_i32_0 = arith.constant 0 : i32
    %c0_i32_1 = arith.constant 0 : i32
    return %c0_i32, %c0_i32_0 : i32, i32
  }
  func.func @transform_3(%arg0: i32, %arg1: i32) -> (i32, i32) {
    %c0_i32 = arith.constant 0 : i32
    %c0_i32_0 = arith.constant 0 : i32
    return %arg0, %c0_i32 : i32, i32
  }
}

</mosaic_0001>

<llo_original>
// kernel: tpu_custom_call.1
$region0: #{tpu_custom_call.1}
  #allocation0 [shape = 'u32[]', space=smem, size = 0x4, offset = 0x4, fixed_abs, tag = 'smem constant byte address 0x4 - core index']
  #allocation1 [shape = 'u32[72,128]{1,0:T(1,128)}', space=vmem, size = 0x9000, scoped, tag = 'internal scratch']
  #allocation2 [shape = 'f32[8,128]{1,0:T(8,128)}', space=vmem, size = 0x1000, scoped, tag = 'scratch operand']
  %s0 = inlined_call_operand.vmem [shape: f32[8,32], index: 0, kind: input, shape index: {}]
  %s1 = inlined_call_operand.vmem [shape: f32[128,32], index: 1, kind: input, shape index: {}]
  %s2 = inlined_call_operand.vmem [shape: f32[1,128], index: 2, kind: input, shape index: {}]
  %s3 = inlined_call_operand.hbm [shape: f32[8,128], index: 3, kind: output, shape index: {}]
  %s4 = sld [smem:[#allocation0]]
  $region30: #{tpu_custom_call.1} parent=0
    _
  %s6 = ssub.s32 1, %s4
  %s7 = scalar_select 0, %s6, %s4
  $region1: #{tpu_custom_call.1} parent=0
    #allocation3 [shape = 'u8[4096]{0}', space=vmem, size = 0x1000, scoped, tag = 'output window, operand 0, single buffered']
    #allocation4 [shape = 's32[1]{0}', space=sflag, size = 0x4, scoped, tag = 'scoped memory for tpu_custom_call.1']
    %8 = vsyncpa [#allocation4], 0
    // Predicated region
    $region2: #{tpu_custom_call.1} parent=1 // pred_check
      _
    $region3: #{tpu_custom_call.1} parent=1 // pred_check_branch
      %10 = sbr.rel (0) target = $region5
    $region4: #{tpu_custom_call.1} parent=1 // pred_region
      _
    $region5: #{tpu_custom_call.1} parent=1 // pred_fallthru
      _
    // Predicated region
    $region6: #{tpu_custom_call.1} parent=1 // pred_check
      _
    $region7: #{tpu_custom_call.1} parent=1 // pred_check_branch
      %12 = sbr.rel (0) target = $region9
    $region8: #{tpu_custom_call.1} parent=1 // pred_region
      _
    $region9: #{tpu_custom_call.1} parent=1 // pred_fallthru
      _
    // Predicated region
    $region10: #{tpu_custom_call.1} parent=1 // pred_check
      _
    $region11: #{tpu_custom_call.1} parent=1 // pred_check_branch
      %14 = sbr.rel (0) target = $region13
    $region12: #{tpu_custom_call.1} parent=1 // pred_region
      _
    $region13: #{tpu_custom_call.1} parent=1 // pred_fallthru
      _
    %p15 = scmp.eq.s32.totalorder 0, 0
    // Predicated region
    $region14: #{tpu_custom_call.1} parent=1 // pred_check
      %p16 = pneg %p15
    $region15: #{tpu_custom_call.1} parent=1 // pred_check_branch
      %18 = sbr.rel (%p16) target = $region17
    $region16: #{tpu_custom_call.1} parent=1 // pred_region
      %19 = vst [vmem:[#allocation2] sm:$0xff] 0.0
    $region17: #{tpu_custom_call.1} parent=1 // pred_fallthru
      _
    %v20 = vld [vmem:[#allocation2] sm:$0xff]
    %v21 = vld [vmem:[%s0] sm:$0xff]
    %v22 = vld [vmem:[%s1] sm:$0xff]
    %v23 = vld [vmem:[%s1 + $0x8] sm:$0xff]
    %v24 = vld [vmem:[%s1 + $0x10] sm:$0xff]
    %v25 = vld [vmem:[%s1 + $0x18] sm:$0xff]
    %v26 = vld [vmem:[%s1 + $0x20] sm:$0xff]
    %v27 = vld [vmem:[%s1 + $0x28] sm:$0xff]
    %v28 = vld [vmem:[%s1 + $0x30] sm:$0xff]
    %v29 = vld [vmem:[%s1 + $0x38] sm:$0xff]
    %v30 = vld [vmem:[%s1 + $0x40] sm:$0xff]
    %v31 = vld [vmem:[%s1 + $0x48] sm:$0xff]
    %v32 = vld [vmem:[%s1 + $0x50] sm:$0xff]
    %v33 = vld [vmem:[%s1 + $0x58] sm:$0xff]
    %v34 = vld [vmem:[%s1 + $0x60] sm:$0xff]
    %v35 = vld [vmem:[%s1 + $0x68] sm:$0xff]
    %v36 = vld [vmem:[%s1 + $0x70] sm:$0xff]
    %v37 = vld [vmem:[%s1 + $0x78] sm:$0xff]
    %vm38 = vcmask 261120
    %v40 = vsel %vm38, %v21, 0
    %v43 = vsel %vm38, %v22, 0
    %v46 = vsel %vm38, %v23, 0
    %v49 = vsel %vm38, %v24, 0
    %v52 = vsel %vm38, %v25, 0
    %v55 = vsel %vm38, %v26, 0
    %v58 = vsel %vm38, %v27, 0
    %v61 = vsel %vm38, %v28, 0
    %v64 = vsel %vm38, %v29, 0
    %v67 = vsel %vm38, %v30, 0
    %v70 = vsel %vm38, %v31, 0
    %v73 = vsel %vm38, %v32, 0
    %v76 = vsel %vm38, %v33, 0
    %v79 = vsel %vm38, %v34, 0
    %v82 = vsel %vm38, %v35, 0
    %v85 = vsel %vm38, %v36, 0
    %v88 = vsel %vm38, %v37, 0
    %90 = vmatpush.xpose.msra.mxu0 %v88
    %91 = vmatpush.xpose.msra.mxu0 %v85
    %92 = vmatpush.xpose.msra.mxu0 %v82
    %93 = vmatpush.xpose.msra.mxu0 %v79
    %94 = vmatpush.xpose.msra.mxu0 %v76
    %95 = vmatpush.xpose.msra.mxu0 %v73
    %96 = vmatpush.xpose.msra.mxu0 %v70
    %97 = vmatpush.xpose.msra.mxu0 %v67
    %98 = vmatpush.xpose.msra.mxu0 %v64
    %99 = vmatpush.xpose.msra.mxu0 %v61
    %100 = vmatpush.xpose.msra.mxu0 %v58
    %101 = vmatpush.xpose.msra.mxu0 %v55
    %102 = vmatpush.xpose.msra.mxu0 %v52
    %103 = vmatpush.xpose.msra.mxu0 %v49
    %104 = vmatpush.xpose.msra.mxu0 %v46
    %105 = vmatpush.xpose.msra.mxu0 %v43
    %106 = vmatmul.f32.gmra.mxu0 %v40
    %v107 = vpop.f32.mrf.mxu0
    %v108 = vadd.f32 0.0, %v107
    %109 = vdwg.mxu0
    %v110 = vadd.f32 %v20, %v108
    %111 = vst [vmem:[#allocation2] sm:$0xff] %v110
    // Predicated region
    $region18: #{tpu_custom_call.1} parent=1 // pred_check
      %p112 = pneg %p15
    $region19: #{tpu_custom_call.1} parent=1 // pred_check_branch
      %114 = sbr.rel (%p112) target = $region21
    $region20: #{tpu_custom_call.1} parent=1 // pred_region
      %v115 = vld [vmem:[#allocation2] sm:$0xff]
      %v116 = vld [vmem:[%s2] sm:$0x1]
      %v118 = vperm.slane %v116, 0
      %v120 = vadd.f32 %v115, %v118
      %121 = vst [vmem:[#allocation3] sm:$0xff] %v120
    $region21: #{tpu_custom_call.1} parent=1 // pred_fallthru
      _
    // Predicated region
    $region22: #{tpu_custom_call.1} parent=1 // pred_check
      _
    $region23: #{tpu_custom_call.1} parent=1 // pred_check_branch
      %123 = sbr.rel (0) target = $region25
    $region24: #{tpu_custom_call.1} parent=1 // pred_region
      %125 = vsyncadd [#allocation4], 0
      %s127 = sshll.u32 [#allocation3], 4
      %s128 = int_to_ptr.vmem [resolvable:$true] %s127
      %s129 = sshll.u32 %s3, 4
      %s130 = int_to_ptr.hbm [resolvable:$true] %s129
      %132 = dma.vmem_to_hbm [thread:$0]  %s128, 128, %s130, [#allocation4]
    $region25: #{tpu_custom_call.1} parent=1 // pred_fallthru
      _
    // Predicated region
    $region26: #{tpu_custom_call.1} parent=1 // pred_check
      _
    $region27: #{tpu_custom_call.1} parent=1 // pred_check_branch
      %134 = sbr.rel (0) target = $region29
    $region28: #{tpu_custom_call.1} parent=1 // pred_region
      %136 = dma.done [#allocation4], 128
    $region29: #{tpu_custom_call.1} parent=1 // pred_fallthru
      _
    %137 = vsyncpa [#allocation4], 1

</llo_original>
